<compile_context>
chip_gen: v6e
topology: v6e:2x2x1
jax: 0.10.0
libtpu: 0.0.40
codegen_flags: <defaults>
</compile_context>

<pallas_src>
import functools
from typing import NamedTuple

import jax
import jax.numpy as jnp
from jax.experimental import pallas as pl
from jax.experimental.pallas import tpu as pltpu


def _round_up(n, m):
    return ((n + m - 1) // m) * m


# --------------------------------------------------------------------------
# Hardware-generation-aware configuration
# --------------------------------------------------------------------------
class _HWConfig(NamedTuple):
    resident_weight_bytes: int   # max bf16 weight kept resident in VMEM
    vmem_clamp_bytes: int        # cap for vmem_limit_bytes
    coltiled_block_rows: int     # default row tile on the column-tiled path


@functools.lru_cache(maxsize=None)
def _hw_config():
    cap = 64 << 20  # conservative default (v7x per-TC physical VMEM)
    try:
        info = pltpu.get_tpu_info()
        for attr in ("vmem_capacity_bytes", "vmem_bytes", "vmem_capacity"):
            v = getattr(info, attr, None)
            if v:
                cap = int(v)
                break
    except Exception:
        pass
    if cap >= (96 << 20):
        # v5e / v6e: 128 MiB physical VMEM. Resident weight path avoids
        # re-streaming W; bm=768 hides the W-column DMA on v6e if streaming.
        return _HWConfig(48 << 20, 96 << 20, 768)
    # v7x (64 MiB per TC) or unknown.
    return _HWConfig(16 << 20, 40 << 20, 512)


@functools.lru_cache(maxsize=None)
def _supports_single_buffering():
    """One-time probe: does this JAX accept pl.Buffered(buffer_count=1)?

    Compiles and runs a tiny kernel so both construction- and lowering-time
    rejections are caught here (not inside the user's jit)."""
    def _k(x_ref, o_ref):
        o_ref[...] = x_ref[...] + 1.0
    try:
        f = pl.pallas_call(
            _k,
            out_shape=jax.ShapeDtypeStruct((8, 128), jnp.float32),
            grid_spec=pltpu.PrefetchScalarGridSpec(
                num_scalar_prefetch=0,
                grid=(1,),
                in_specs=[pl.BlockSpec((8, 128), lambda i: (0, 0),
                                       pipeline_mode=pl.Buffered(1))],
                out_specs=pl.BlockSpec((8, 128), lambda i: (0, 0)),
            ),
        )
        jax.block_until_ready(f(jnp.zeros((8, 128), jnp.float32)))
        return True
    except Exception:
        return False


# --------------------------------------------------------------------------
# Kernels
# --------------------------------------------------------------------------
def _sigmoid_eup(logits_f32):
    # exp on the EUP + approximate reciprocal on the EUP (frees VPU slots
    # versus an exact divide). Clip keeps the approx reciprocal away from inf.
    z = jnp.clip(logits_f32, -30.0, 30.0)
    return pl.reciprocal(1.0 + jnp.exp(-z), approx=True)


def _gate_kernel_resident(x_ref, wT_ref, b_ref, o_ref):
    # x_ref: (bm, D) | wT_ref: (D, D) bf16 | b_ref: (1, D) f32 | o_ref: (bm, D)
    x = x_ref[...]
    logits = jnp.dot(x.astype(jnp.bfloat16), wT_ref[...],
                     preferred_element_type=jnp.float32)        # MXU, f32 acc
    gate = _sigmoid_eup(logits + b_ref[...])
    o_ref[...] = (x.astype(jnp.float32) * gate).astype(o_ref.dtype)


def _gate_kernel_coltiled(x_ref, wT_ref, b_ref, o_ref, *, block_cols):
    # x_ref: (bm, D) full-K row tile (also the source of the gate columns)
    # wT_ref: (D, bn) bf16 | b_ref: (1, bn) f32 | o_ref: (bm, bn)
    x = x_ref[...]
    logits = jnp.dot(x.astype(jnp.bfloat16), wT_ref[...],
                     preferred_element_type=jnp.float32)
    gate = _sigmoid_eup(logits + b_ref[...])
    # Gate columns come from the already-resident row tile (no duplicate x DMA).
    start = pl.multiple_of(pl.program_id(1) * block_cols, block_cols)
    x_cols = x_ref[:, pl.ds(start, block_cols)]
    o_ref[...] = (x_cols.astype(jnp.float32) * gate).astype(o_ref.dtype)


# --------------------------------------------------------------------------
# pallas_call wrappers
# --------------------------------------------------------------------------
def _resident_call(x2d, wT, b2d, M, D, block_rows, out_dtype,
                   single_buffer_weight, cfg):
    grid = (pl.cdiv(M, block_rows),)
    xb = jnp.dtype(x2d.dtype).itemsize
    ob = jnp.dtype(out_dtype).itemsize
    n_w = 1 if single_buffer_weight else 2

    vmem = (2 * block_rows * D * (xb + ob)          # x + out tiles, double buffered
            + n_w * (D * D * 2 + D * 4)             # resident bf16 weight + bias
            + (2 << 20))                            # headroom
    vmem = int(min(max(vmem, 8 << 20), cfg.vmem_clamp_bytes))

    if single_buffer_weight:
        # Constant index_map -> revisited every step; single-buffer halves VMEM.
        w_spec = pl.BlockSpec((D, D), lambda i: (0, 0), pipeline_mode=pl.Buffered(1))
        b_spec = pl.BlockSpec((1, D), lambda i: (0, 0), pipeline_mode=pl.Buffered(1))
    else:
        w_spec = pl.BlockSpec((D, D), lambda i: (0, 0))
        b_spec = pl.BlockSpec((1, D), lambda i: (0, 0))

    cost = pl.CostEstimate(
        flops=2 * M * D * D,
        transcendentals=M * D,
        bytes_accessed=M * D * (xb + ob) + D * D * 2 + D * 4,
    )

    return pl.pallas_call(
        _gate_kernel_resident,
        out_shape=jax.ShapeDtypeStruct((M, D), out_dtype),
        grid_spec=pltpu.PrefetchScalarGridSpec(
            num_scalar_prefetch=0,
            grid=grid,
            in_specs=[
                pl.BlockSpec((block_rows, D), lambda i: (i, 0)),   # x row tile
                w_spec,                                            # W^T (resident)
                b_spec,                                            # bias (resident)
            ],
            out_specs=pl.BlockSpec((block_rows, D), lambda i: (i, 0)),
        ),
        compiler_params=pltpu.CompilerParams(
            dimension_semantics=("parallel",),
            vmem_limit_bytes=vmem),
        cost_estimate=cost,
    )(x2d, wT, b2d)


def _coltiled_call(x2d, wT, b2d, M, D, block_rows, block_cols, out_dtype, cfg):
    assert D % block_cols == 0
    grid = (pl.cdiv(M, block_rows), D // block_cols)
    xb = jnp.dtype(x2d.dtype).itemsize
    ob = jnp.dtype(out_dtype).itemsize

    vmem = (2 * block_rows * D * xb                 # x row tiles (full K)
            + 2 * D * block_cols * 2                # bf16 weight column tiles
            + 2 * block_rows * block_cols * ob      # out tiles
            + 2 * block_cols * 4                    # bias tiles
            + (2 << 20))
    vmem = int(min(max(vmem, 8 << 20), cfg.vmem_clamp_bytes))

    n_row_tiles = pl.cdiv(M, block_rows)
    cost = pl.CostEstimate(
        flops=2 * M * D * D,
        transcendentals=M * D,
        bytes_accessed=M * D * (xb + ob) + n_row_tiles * D * D * 2 + D * 4,
    )

    kernel = functools.partial(_gate_kernel_coltiled, block_cols=block_cols)
    return pl.pallas_call(
        kernel,
        out_shape=jax.ShapeDtypeStruct((M, D), out_dtype),
        grid_spec=pltpu.PrefetchScalarGridSpec(
            num_scalar_prefetch=0,
            grid=grid,
            in_specs=[
                pl.BlockSpec((block_rows, D), lambda i, j: (i, 0)),    # x (K + gate)
                pl.BlockSpec((D, block_cols), lambda i, j: (0, j)),    # W^T cols
                pl.BlockSpec((1, block_cols), lambda i, j: (0, j)),    # bias cols
            ],
            out_specs=pl.BlockSpec((block_rows, block_cols), lambda i, j: (i, j)),
        ),
        compiler_params=pltpu.CompilerParams(
            dimension_semantics=("parallel", "parallel"),
            vmem_limit_bytes=vmem),
        cost_estimate=cost,
    )(x2d, wT, b2d)


# --------------------------------------------------------------------------
# Public API
# --------------------------------------------------------------------------
def prepare_gate_params(weight, bias):
    """One-time parameter prep (hoisted out of the per-call path): transpose
    the PyTorch-layout (out, in) weight so the kernel computes x @ W^T
    directly, and cast it to bf16 (MXU-native, half the footprint)."""
    wT = jnp.asarray(weight).T.astype(jnp.bfloat16)           # (D, D)
    b_row = jnp.asarray(bias, jnp.float32).reshape(1, -1)     # (1, D)
    return wT, b_row


def _pick_block_cols(D, requested):
    """Lane-aligned column tile that divides D (512/256 preferred: fills the
    256x256 MXU on v6e/v7x; 128 is fine for v5e). None -> no column tiling."""
    if requested is not None:
        bc = max(128, (min(requested, D) // 128) * 128)
        if bc < D and D % bc == 0:
            return bc
    for bc in (512, 256, 128):
        if bc < D and D % bc == 0:
            return bc
    return None


def adaptive_attention(x, wT_bf16, bias_row, *, block_rows=None, block_cols=None):
    """x: (B, S, D) float32 or bfloat16; wT_bf16/bias_row from prepare_gate_params()."""
    B, S, D = x.shape
    M = B * S
    x2d = x.reshape(M, D)
    cfg = _hw_config()
    weight_bytes = D * D * 2

    # Path selection: keep the weight resident when it fits comfortably,
    # otherwise stream it in column tiles.
    want_column = (block_cols is not None) or (weight_bytes > cfg.resident_weight_bytes)
    bc = _pick_block_cols(D, block_cols) if want_column else None
    if want_column and bc is None:
        want_column = False

    single_buffer_weight = False
    if not want_column:
        if weight_bytes > (2 << 20):
            single_buffer_weight = _supports_single_buffering()
        eff_weight = weight_bytes if single_buffer_weight else 2 * weight_bytes
        if eff_weight > cfg.resident_weight_bytes:
            # Double-buffered weight would blow the VMEM budget -> column-tile.
            bc = _pick_block_cols(D, block_cols)
            if bc is not None:
                want_column = True

    if want_column:
        if block_rows is None:
            block_rows = cfg.coltiled_block_rows    # big enough to hide W-tile DMA
        block_rows = max(8, min(_round_up(block_rows, 8), _round_up(M, 8)))
        out2d = _coltiled_call(x2d, wT_bf16, bias_row, M, D,
                               block_rows, bc, x.dtype, cfg)
    else:
        if block_rows is None:
            block_rows = 512 if D <= 1024 else 256
        block_rows = max(8, min(_round_up(block_rows, 8), _round_up(M, 8)))
        # Keep enough grid steps that double-buffering reaches steady state and
        # the 'parallel' row axis can shard across v7x's 2 TensorCores.
        if pl.cdiv(M, block_rows) < 8 and block_rows > 128:
            block_rows = min(_round_up(M, 8),
                             max(128, _round_up(pl.cdiv(M, 8), 8)))
        out2d = _resident_call(x2d, wT_bf16, bias_row, M, D, block_rows,
                               x.dtype, single_buffer_weight, cfg)

    return out2d.reshape(B, S, D)


def _reference(x, weight, bias):
    logits = jnp.einsum("bsd,ed->bse", x.astype(jnp.float32), weight) + bias
    return x.astype(jnp.float32) * jax.nn.sigmoid(logits)


if __name__ == "__main__":
    key = jax.random.PRNGKey(0)
    k1, k2, k3, k4, k5, k6 = jax.random.split(key, 6)

    # ---- Test 1: module-implied small shape (resident-weight path) ----
    B, S, D = 2, 8, 32
    x = jax.random.normal(k1, (B, S, D), dtype=jnp.float32)
    bound = 1.0 / (D ** 0.5)
    weight = jax.random.uniform(k2, (D, D), minval=-bound, maxval=bound,
                                dtype=jnp.float32)
    bias = jax.random.uniform(k3, (D,), minval=-bound, maxval=bound,
                              dtype=jnp.float32)

    wT, b_row = prepare_gate_params(weight, bias)
    out = adaptive_attention(x, wT, b_row)
    out = jax.block_until_ready(out)

    ref = _reference(x, weight, bias)
    assert out.shape == (B, S, D)
    # bf16 matmul operands (f32 accumulation) + approx reciprocal -> loose tol.
    assert jnp.allclose(out, ref, atol=2e-2, rtol=2e-2), "mismatch (resident path)"

    # ---- Test 2: exercise the column-tiled (large-D / v7x) path at small scale ----
    B2, S2, D2 = 2, 32, 256
    x2 = jax.random.normal(k4, (B2, S2, D2), dtype=jnp.float32)
    bound2 = 1.0 / (D2 ** 0.5)
    weight2 = jax.random.uniform(k5, (D2, D2), minval=-bound2, maxval=bound2,
                                 dtype=jnp.float32)
    bias2 = jax.random.uniform(k6, (D2,), minval=-bound2, maxval=bound2,
                               dtype=jnp.float32)
    wT2, b2_row = prepare_gate_params(weight2, bias2)
    out2 = adaptive_attention(x2, wT2, b2_row, block_rows=32, block_cols=128)
    out2 = jax.block_until_ready(out2)
    ref2 = _reference(x2, weight2, bias2)
    assert jnp.allclose(out2, ref2, atol=2e-2, rtol=2e-2), "mismatch (column-tiled path)"

    print("KERNEL_OK")
</pallas_src>

<mosaic_0001>
module attributes {stable_mosaic.version = 11 : i64} {
  func.func @_gate_kernel_resident(%arg0: i32, %arg1: memref<16x32xf32, #tpu.memory_space<vmem>>, %arg2: memref<32x32xbf16, #tpu.memory_space<vmem>>, %arg3: memref<1x32xf32, #tpu.memory_space<vmem>>, %arg4: memref<16x32xf32, #tpu.memory_space<vmem>>) attributes {dimension_semantics = [#tpu.dimension_semantics<parallel>], iteration_bounds = array<i64: 1>, scalar_prefetch = 0 : i64, scratch_operands = 0 : i64, tpu.core_type = #tpu.core_type<tc>, window_params = [{transform_indices = @transform_0, window_bounds = array<i64: 16, 32>}, {pipeline_mode = #tpu.pipeline_mode<synchronous>, transform_indices = @transform_1, window_bounds = array<i64: 32, 32>}, {pipeline_mode = #tpu.pipeline_mode<synchronous>, transform_indices = @transform_2, window_bounds = array<i64: 1, 32>}, {transform_indices = @transform_3, window_bounds = array<i64: 16, 32>}]} {
    %c0 = arith.constant 0 : index
    %c0_0 = arith.constant 0 : index
    %0 = vector.load %arg1[%c0, %c0_0] : memref<16x32xf32, #tpu.memory_space<vmem>>, vector<16x32xf32>
    %1 = arith.truncf %0 : vector<16x32xf32> to vector<16x32xbf16>
    %c0_1 = arith.constant 0 : index
    %c0_2 = arith.constant 0 : index
    %2 = vector.load %arg2[%c0_1, %c0_2] : memref<32x32xbf16, #tpu.memory_space<vmem>>, vector<32x32xbf16>
    %cst = arith.constant dense<0.000000e+00> : vector<16x32xf32>
    %3 = tpu.matmul %1, %2, %cst {dimension_numbers = #tpu.dot_dimension_numbers<[1], [0], [0], [1], [0, 0, 1, 1], [], []>} : vector<16x32xbf16>, vector<32x32xbf16>, vector<16x32xf32> -> vector<16x32xf32>
    %c0_3 = arith.constant 0 : index
    %c0_4 = arith.constant 0 : index
    %4 = vector.load %arg3[%c0_3, %c0_4] : memref<1x32xf32, #tpu.memory_space<vmem>>, vector<1x32xf32>
    %5 = vector.broadcast %4 : vector<1x32xf32> to vector<16x32xf32>
    %6 = arith.addf %3, %5 : vector<16x32xf32>
    %cst_5 = arith.constant -3.000000e+01 : f32
    %cst_6 = arith.constant 3.000000e+01 : f32
    %7 = vector.broadcast %cst_5 : f32 to vector<16x32xf32>
    %8 = arith.maximumf %7, %6 : vector<16x32xf32>
    %9 = vector.broadcast %cst_6 : f32 to vector<16x32xf32>
    %10 = arith.minimumf %9, %8 : vector<16x32xf32>
    %cst_7 = arith.constant 0.000000e+00 : f32
    %11 = vector.broadcast %cst_7 : f32 to vector<16x32xf32>
    %12 = arith.subf %11, %10 : vector<16x32xf32>
    %13 = math.exp %12 : vector<16x32xf32>
    %cst_8 = arith.constant 1.000000e+00 : f32
    %14 = vector.broadcast %cst_8 : f32 to vector<16x32xf32>
    %15 = arith.addf %14, %13 : vector<16x32xf32>
    %16 = tpu.reciprocal %15 {approx = true} : vector<16x32xf32> -> vector<16x32xf32>
    %17 = arith.mulf %0, %16 : vector<16x32xf32>
    %c0_9 = arith.constant 0 : index
    %c0_10 = arith.constant 0 : index
    %18 = vector.load %arg4[%c0_9, %c0_10] : memref<16x32xf32, #tpu.memory_space<vmem>>, vector<16x32xf32>
    tpu.vector_store %arg4[%c0_9, %c0_10], %17 {strides = array<i32>} : memref<16x32xf32, #tpu.memory_space<vmem>>, vector<16x32xf32>,
    return
  }
  func.func @transform_0(%arg0: i32) -> (i32, i32) {
    %c0_i32 = arith.constant 0 : i32
    %c0_i32_0 = arith.constant 0 : i32
    return %arg0, %c0_i32 : i32, i32
  }
  func.func @transform_1(%arg0: i32) -> (i32, i32) {
    %c0_i32 = arith.constant 0 : i32
    %c0_i32_0 = arith.constant 0 : i32
    %c0_i32_1 = arith.constant 0 : i32
    return %c0_i32, %c0_i32_0 : i32, i32
  }
  func.func @transform_2(%arg0: i32) -> (i32, i32) {
    %c0_i32 = arith.constant 0 : i32
    %c0_i32_0 = arith.constant 0 : i32
    %c0_i32_1 = arith.constant 0 : i32
    return %c0_i32, %c0_i32_0 : i32, i32
  }
  func.func @transform_3(%arg0: i32) -> (i32, i32) {
    %c0_i32 = arith.constant 0 : i32
    %c0_i32_0 = arith.constant 0 : i32
    return %arg0, %c0_i32 : i32, i32
  }
}

</mosaic_0001>

<llo_original>
// kernel: tpu_custom_call.1
$region0: #{tpu_custom_call.1}
  #allocation0 [shape = 'u32[]', space=smem, size = 0x4, offset = 0x4, fixed_abs, tag = 'smem constant byte address 0x4 - core index']
  #allocation1 [shape = 'u32[144,128]{1,0:T(1,128)}', space=vmem, size = 0x12000, scoped, tag = 'internal scratch']
  %s0 = inlined_call_operand.hbm [shape: f32[16,32], index: 0, kind: input, shape index: {}]
  %s1 = inlined_call_operand.hbm [shape: bf16[32,32], index: 1, kind: input, shape index: {}]
  %s2 = inlined_call_operand.vmem [shape: f32[1,32], index: 2, kind: input, shape index: {}]
  %s3 = inlined_call_operand.hbm [shape: f32[16,32], index: 3, kind: output, shape index: {}]
  %s4 = sld [smem:[#allocation0]]
  $region30: #{tpu_custom_call.1} parent=0
    _
  %s6 = ssub.s32 1, %s4
  %s7 = scalar_select 0, %s6, %s4
  $region1: #{tpu_custom_call.1} parent=0
    #allocation2 [shape = 'u8[8192]{0}', space=vmem, size = 0x2000, scoped, tag = 'input window, operand 0, single buffered']
    #allocation3 [shape = 's32[1]{0}', space=sflag, size = 0x4, scoped, tag = 'scoped memory for tpu_custom_call.1']
    #allocation4 [shape = 's32[1]{0}', space=sflag, size = 0x4, scoped, tag = 'scoped memory for tpu_custom_call.1']
    #allocation5 [shape = 'u8[8192]{0}', space=vmem, size = 0x2000, scoped, tag = 'input window, operand 1, single buffered']
    #allocation6 [shape = 's32[1]{0}', space=sflag, size = 0x4, scoped, tag = 'scoped memory for tpu_custom_call.1']
    #allocation7 [shape = 'u8[8192]{0}', space=vmem, size = 0x2000, scoped, tag = 'output window, operand 0, single buffered']
    %8 = vsyncpa [#allocation3], 0
    %9 = vsyncpa [#allocation6], 0
    %10 = vsyncpa [#allocation4], 0
    // Predicated region
    $region2: #{tpu_custom_call.1} parent=1 // pred_check
      _
    $region3: #{tpu_custom_call.1} parent=1 // pred_check_branch
      %12 = sbr.rel (0) target = $region5
    $region4: #{tpu_custom_call.1} parent=1 // pred_region
      %s14 = ssub.s32 256, 256
      %15 = vsyncadd [#allocation3], %s14
      %s16 = sshll.u32 [#allocation2], 4
      %s17 = int_to_ptr.vmem [resolvable:$true] %s16
      %22 = dma.hbm_to_vmem [thread:$0]  %s0, 256, %s17, [#allocation3], 128, 128, 8
    $region5: #{tpu_custom_call.1} parent=1 // pred_fallthru
      _
    // Predicated region
    $region6: #{tpu_custom_call.1} parent=1 // pred_check
      _
    $region7: #{tpu_custom_call.1} parent=1 // pred_check_branch
      %24 = sbr.rel (0) target = $region9
    $region8: #{tpu_custom_call.1} parent=1 // pred_region
      %s26 = ssub.s32 256, 256
      %27 = vsyncadd [#allocation6], %s26
      %s28 = sshll.u32 [#allocation5], 4
      %s29 = int_to_ptr.vmem [resolvable:$true] %s28
      %34 = dma.hbm_to_vmem [thread:$0]  %s1, 256, %s29, [#allocation6], 64, 64, 4
    $region9: #{tpu_custom_call.1} parent=1 // pred_fallthru
      _
    // Predicated region
    $region10: #{tpu_custom_call.1} parent=1 // pred_check
      _
    $region11: #{tpu_custom_call.1} parent=1 // pred_check_branch
      %36 = sbr.rel (0) target = $region13
    $region12: #{tpu_custom_call.1} parent=1 // pred_region
      _
    $region13: #{tpu_custom_call.1} parent=1 // pred_fallthru
      _
    // Predicated region
    $region14: #{tpu_custom_call.1} parent=1 // pred_check
      _
    $region15: #{tpu_custom_call.1} parent=1 // pred_check_branch
      %38 = sbr.rel (0) target = $region17
    $region16: #{tpu_custom_call.1} parent=1 // pred_region
      %39 = dma.done [#allocation3], 256
    $region17: #{tpu_custom_call.1} parent=1 // pred_fallthru
      _
    // Predicated region
    $region18: #{tpu_custom_call.1} parent=1 // pred_check
      _
    $region19: #{tpu_custom_call.1} parent=1 // pred_check_branch
      %41 = sbr.rel (0) target = $region21
    $region20: #{tpu_custom_call.1} parent=1 // pred_region
      %42 = dma.done [#allocation6], 256
    $region21: #{tpu_custom_call.1} parent=1 // pred_fallthru
      _
    %v44 = vld [vmem:[#allocation2] sm:$0xff]
    %v45 = vld [vmem:[#allocation2 + $0x8] sm:$0xff]
    %v46 = vpack.c.bf16 %v45, %v44
    %v47 = vld [vmem:[#allocation5] sm:$0xf]
    %v48 = vld [vmem:[#allocation5 + $0x4] sm:$0xf]
    %v49 = vld [vmem:[#allocation5 + $0x8] sm:$0xf]
    %v50 = vld [vmem:[#allocation5 + $0xc] sm:$0xf]
    %v51 = vld [vmem:[%s2] sm:$0x1]
    %v53 = vlaneseq
    %v54 = vshrl.u32 %v53, 7
    %v55 = vsub.s32 0, %v54
    %v56 = vrot.slane %v51, %v55
    %v62 = vunpack.c.l.b16 %v47
    %v63 = vunpack.c.l.b16 %v48
    %v64 = vunpack.c.l.b16 %v49
    %v65 = vunpack.c.l.b16 %v50
    %v66 = vpack.c.b16 %v63, %v62
    %v67 = vpack.c.b16 %v65, %v64
    %vm70 = vcmask 261120
    %v72 = vsel %vm70, %v46, 0
    %74 = vmatprep.subr.bf16.mxu0 0
    %75 = vmatpush1.bf16.msra.mxu0 0
    %76 = vmatprep.subr.bf16.mxu0 0
    %77 = vmatpush1.bf16.msra.mxu0 0
    %78 = vmatprep.subr.bf16.mxu0 0
    %79 = vmatpush1.bf16.msra.mxu0 0
    %80 = vmatprep.subr.bf16.mxu0 0
    %81 = vmatpush1.bf16.msra.mxu0 0
    %82 = vmatprep.subr.bf16.mxu0 0
    %83 = vmatpush1.bf16.msra.mxu0 0
    %84 = vmatprep.subr.bf16.mxu0 0
    %85 = vmatpush1.bf16.msra.mxu0 0
    %86 = vmatprep.subr.bf16.mxu0 0
    %87 = vmatpush1.bf16.msra.mxu0 %v67
    %88 = vmatprep.subr.bf16.mxu0 0
    %89 = vmatpush1.bf16.msra.mxu0 %v66
    %90 = vmatprep.subr.bf16.mxu0 0
    %91 = vmatpush2.bf16.msra.mxu0 0
    %92 = vmatprep.subr.bf16.mxu0 0
    %93 = vmatpush2.bf16.msra.mxu0 0
    %94 = vmatprep.subr.bf16.mxu0 0
    %95 = vmatpush2.bf16.msra.mxu0 0
    %96 = vmatprep.subr.bf16.mxu0 0
    %97 = vmatpush2.bf16.msra.mxu0 0
    %98 = vmatprep.subr.bf16.mxu0 0
    %99 = vmatpush2.bf16.msra.mxu0 0
    %100 = vmatprep.subr.bf16.mxu0 0
    %101 = vmatpush2.bf16.msra.mxu0 0
    %102 = vmatprep.subr.bf16.mxu0 0
    %103 = vmatpush2.bf16.msra.mxu0 0
    %104 = vmatprep.subr.bf16.mxu0 0
    %105 = vmatpush2.bf16.msra.mxu0 0
    %106 = vmatprep.mubr.bf16.mxu0 0
    %107 = vmatmul.mubr.bf16.gmra.mxu0 %v72
    %v108 = vpop.f32.mrf.mxu0
    %v109 = vadd.f32 %v56, %v108
    %v110 = vpop.f32.mrf.mxu0
    %v111 = vpop.f32.mrf.mxu0
    %v112 = vadd.f32 %v56, %v111
    %v113 = vpop.f32.mrf.mxu0
    %114 = vdwg.mxu0
    %v115 = vmax.f32 %v109, -30.0
    %v116 = vmax.f32 %v112, -30.0
    %v117 = vmin.f32 %v115, 30.0
    %v118 = vmin.f32 %v116, 30.0
    %v119 = vsub.f32 0.0, %v117
    %v120 = vsub.f32 0.0, %v118
    %v121 = vmul.f32 %v119, 1.442695
    %v122 = vpow.pop %v121
    %v123 = vmul.f32 %v120, 1.442695
    %v124 = vpow.pop %v123
    %v125 = vadd.f32 %v122, 1.0
    %v126 = vadd.f32 %v124, 1.0
    %v127 = vrcp.pop %v125
    %v128 = vrcp.pop %v126
    %v129 = vmul.f32 %v44, %v127
    %v130 = vmul.f32 %v45, %v128
    %131 = vst.msk [vmem:[#allocation7] sm:$0xff] %vm70, %v129
    %132 = vst.msk [vmem:[#allocation7 + $0x8] sm:$0xff] %vm70, %v130
    // Predicated region
    $region22: #{tpu_custom_call.1} parent=1 // pred_check
      _
    $region23: #{tpu_custom_call.1} parent=1 // pred_check_branch
      %134 = sbr.rel (0) target = $region25
    $region24: #{tpu_custom_call.1} parent=1 // pred_region
      %s136 = ssub.s32 256, 256
      %137 = vsyncadd [#allocation4], %s136
      %s138 = sshll.u32 [#allocation7], 4
      %s139 = int_to_ptr.vmem [resolvable:$true] %s138
      %144 = dma.vmem_to_hbm [thread:$0]  %s139, 256, %s3, [#allocation4], 128, 128, 8
    $region25: #{tpu_custom_call.1} parent=1 // pred_fallthru
      _
    // Predicated region
    $region26: #{tpu_custom_call.1} parent=1 // pred_check
      _
    $region27: #{tpu_custom_call.1} parent=1 // pred_check_branch
      %146 = sbr.rel (0) target = $region29
    $region28: #{tpu_custom_call.1} parent=1 // pred_region
      %147 = dma.done [#allocation4], 256
    $region29: #{tpu_custom_call.1} parent=1 // pred_fallthru
      _
    %148 = vsyncpa [#allocation3], 1
    %149 = vsyncpa [#allocation6], 1
    %150 = vsyncpa [#allocation4], 1

</llo_original>
